<compile_context>
chip_gen: v7x
topology: tpu7x:2x2x1
jax: 0.10.0
libtpu: 0.0.40
codegen_flags: <defaults>
</compile_context>

<pallas_src>
import jax
import jax.numpy as jnp
from jax.experimental import pallas as pl
from jax.experimental.pallas import tpu as pltpu

_LANES = 128
_SUBLANES = 8


def _round_up(n, m):
    return ((n + m - 1) // m) * m


# ----------------------------------------------------------------------------
# Kernels
# ----------------------------------------------------------------------------
def _mlp2(xs, w1_ref, b1_ref, w2_ref, b2_ref):
    """Shared 2-layer MLP math: MXU matmuls with f32 accumulation, f32 VPU
    elementwise (bias + ReLU) -- correct on v5e which has no bf16 VPU path."""
    h = jnp.dot(xs, w1_ref[...], preferred_element_type=jnp.float32)
    h = jnp.maximum(h + b1_ref[...].astype(jnp.float32), 0.0)       # (M, HID_P)
    e = jnp.dot(h.astype(w2_ref.dtype), w2_ref[...],
                preferred_element_type=jnp.float32)
    return e + b2_ref[...].astype(jnp.float32)                      # (M, EMB_P)


def _triplet_kernel(x1_ref, x2_ref, x3_ref,
                    w1_ref, b1_ref, w2_ref, b2_ref, o_ref):
    """x*_ref: (B_p, D_in_p)  ->  o_ref: (3*B_p, EMB_P), lane/sublane dense.

    The triplet axis is folded into M in-register (no VMEM scratch round
    trip); each strip is a multiple of 8 sublanes so the concat is tile
    aligned and cheap."""
    xs = jnp.concatenate([x1_ref[...], x2_ref[...], x3_ref[...]], axis=0)
    o_ref[...] = _mlp2(xs, w1_ref, b1_ref, w2_ref, b2_ref).astype(o_ref.dtype)


def _single_kernel(x_ref, w1_ref, b1_ref, w2_ref, b2_ref, o_ref):
    """Single-input fast path for get_embedding (B rows, not 3B)."""
    o_ref[...] = _mlp2(x_ref[...], w1_ref, b1_ref, w2_ref, b2_ref
                       ).astype(o_ref.dtype)


# ----------------------------------------------------------------------------
# pallas_call wrappers
# ----------------------------------------------------------------------------
def _params_and_cost(m_rows, d_in_p, hid_p, emb_p, operand_bytes):
    """CompilerParams (vmem limit from the real working set) + CostEstimate."""
    working = (m_rows * d_in_p * operand_bytes            # x operand(s)
               + d_in_p * hid_p * operand_bytes           # W1 (dominant)
               + hid_p * emb_p * operand_bytes            # W2
               + (hid_p + emb_p) * operand_bytes          # biases
               + m_rows * hid_p * 4                       # h (f32)
               + m_rows * emb_p * 4)                      # out (f32)
    # Headroom for compiler internals; capped at 64 MiB so the same budget is
    # valid on v7x (64 MiB VMEM) as well as v5e/v6e (128 MiB).  Larger sizes
    # should use the tiled path (see TODO at top) rather than a bigger limit.
    vmem_limit = int(min(64 << 20, max(16 << 20, 2 * working + (4 << 20))))
    flops = 2 * m_rows * (d_in_p * hid_p + hid_p * emb_p)
    bytes_accessed = int(
        m_rows * d_in_p * operand_bytes
        + (d_in_p * hid_p + hid_p * emb_p + hid_p + emb_p) * operand_bytes
        + m_rows * emb_p * 4)
    cp = pltpu.CompilerParams(vmem_limit_bytes=vmem_limit)
    ce = pl.CostEstimate(flops=flops, transcendentals=0,
                         bytes_accessed=bytes_accessed)
    return cp, ce


def triplet_embed(x1f, x2f, x3f, w1_p, b1_p, w2_p, b2_p):
    """x*f: (B_p, D_in_p) padded; returns (3*B_p, EMB_P) float32."""
    b_p, d_in_p = x1f.shape
    hid_p, emb_p = w1_p.shape[1], w2_p.shape[1]
    m = 3 * b_p
    cp, ce = _params_and_cost(m, d_in_p, hid_p, emb_p,
                              jnp.dtype(x1f.dtype).itemsize)
    vmem_spec = pl.BlockSpec(memory_space=pltpu.MemorySpace.VMEM)
    return pl.pallas_call(
        _triplet_kernel,
        out_shape=jax.ShapeDtypeStruct((m, emb_p), jnp.float32),
        in_specs=[vmem_spec] * 7,
        out_specs=vmem_spec,
        compiler_params=cp,
        cost_estimate=ce,
    )(x1f, x2f, x3f, w1_p, b1_p, w2_p, b2_p)


def single_embed(xf, w1_p, b1_p, w2_p, b2_p):
    """xf: (B_p, D_in_p) padded; returns (B_p, EMB_P) float32."""
    b_p, d_in_p = xf.shape
    hid_p, emb_p = w1_p.shape[1], w2_p.shape[1]
    cp, ce = _params_and_cost(b_p, d_in_p, hid_p, emb_p,
                              jnp.dtype(xf.dtype).itemsize)
    vmem_spec = pl.BlockSpec(memory_space=pltpu.MemorySpace.VMEM)
    return pl.pallas_call(
        _single_kernel,
        out_shape=jax.ShapeDtypeStruct((b_p, emb_p), jnp.float32),
        in_specs=[vmem_spec] * 5,
        out_specs=vmem_spec,
        compiler_params=cp,
        cost_estimate=ce,
    )(xf, w1_p, b1_p, w2_p, b2_p)


# ----------------------------------------------------------------------------
# Module wrapper
# ----------------------------------------------------------------------------
class TripletNetPallas:
    """JAX/Pallas counterpart of TripletNet wrapping a 2-layer MLP embedding net.

    compute_dtype=jnp.bfloat16 is recommended on v6e/v7x (halves W1/x HBM+VMEM
    bytes, f32 accumulation is preserved); f32 is the default here so the demo
    matches the f32 reference at tight tolerance.
    """

    def __init__(self, d_in, hid, emb, key, compute_dtype=jnp.float32):
        k1, k2, k3, k4 = jax.random.split(key, 4)
        self.d_in, self.hid, self.emb = d_in, hid, emb
        self.compute_dtype = compute_dtype

        # Deterministic synthetic parameters (not a checkpoint load), f32 master.
        w1 = jax.random.normal(k1, (d_in, hid), jnp.float32) * (1.0 / jnp.sqrt(d_in))
        b1 = jax.random.normal(k2, (1, hid), jnp.float32) * 0.01
        w2 = jax.random.normal(k3, (hid, emb), jnp.float32) * (1.0 / jnp.sqrt(hid))
        b2 = jax.random.normal(k4, (1, emb), jnp.float32) * 0.01
        self.w1, self.b1, self.w2, self.b2 = w1, b1, w2, b2   # for reference check

        # Zero-pad D_in / HID / EMB to lane multiples (128): MXU tiles and the
        # output store are lane-dense.  Padding is mathematically inert: padded
        # x columns hit zero W1 rows, padded W1 columns are zero (ReLU(0)=0),
        # padded W2 rows are zero, padded output columns are sliced off.
        d_in_p = _round_up(d_in, _LANES)
        hid_p = _round_up(hid, _LANES)
        emb_p = _round_up(emb, _LANES)
        self.d_in_p, self.hid_p, self.emb_p = d_in_p, hid_p, emb_p
        dt = compute_dtype
        self.w1_p = jnp.zeros((d_in_p, hid_p), dt).at[:d_in, :hid].set(w1.astype(dt))
        self.b1_p = jnp.zeros((1, hid_p), dt).at[:, :hid].set(b1.astype(dt))
        self.w2_p = jnp.zeros((hid_p, emb_p), dt).at[:hid, :emb].set(w2.astype(dt))
        self.b2_p = jnp.zeros((1, emb_p), dt).at[:, :emb].set(b2.astype(dt))

    def _flatten(self, x_nchw):
        # Matches torch x.view(B, -1): contiguous row-major reshape.  Rows are
        # zero-padded to a sublane multiple (8) and columns to D_in_p so the
        # kernel operands are tile-aligned.
        B = x_nchw.shape[0]
        xf = x_nchw.reshape(B, -1).astype(self.compute_dtype)
        b_p = _round_up(B, _SUBLANES)
        pad_r, pad_c = b_p - B, self.d_in_p - self.d_in
        if pad_r or pad_c:
            xf = jnp.pad(xf, ((0, pad_r), (0, pad_c)))
        return xf

    def __call__(self, x1, x2, x3):
        B = x1.shape[0]
        x1f, x2f, x3f = self._flatten(x1), self._flatten(x2), self._flatten(x3)
        b_p = x1f.shape[0]
        out = triplet_embed(x1f, x2f, x3f,
                            self.w1_p, self.b1_p, self.w2_p, self.b2_p)
        out = out[:, :self.emb]                     # drop lane padding
        return (out[0 * b_p:0 * b_p + B],
                out[1 * b_p:1 * b_p + B],
                out[2 * b_p:2 * b_p + B])

    def get_embedding(self, x):
        # Single-input fast path: B rows, not 3B (3x fewer FLOPs / input DMA).
        B = x.shape[0]
        xf = self._flatten(x)
        out = single_embed(xf, self.w1_p, self.b1_p, self.w2_p, self.b2_p)
        return out[:B, :self.emb]


def _reference(net, x1, x2, x3):
    def emb(x):
        xf = x.reshape(x.shape[0], -1)
        h = jnp.maximum(xf @ net.w1 + net.b1, 0.0)
        return h @ net.w2 + net.b2
    return emb(x1), emb(x2), emb(x3)


if __name__ == "__main__":
    key = jax.random.PRNGKey(0)
    kx1, kx2, kx3, kp = jax.random.split(key, 4)

    B, C, H, W = 2, 4, 16, 16          # small NCHW inputs
    HID, EMB = 32, 8
    D_in = C * H * W

    x1 = jax.random.normal(kx1, (B, C, H, W), jnp.float32)
    x2 = jax.random.normal(kx2, (B, C, H, W), jnp.float32)
    x3 = jax.random.normal(kx3, (B, C, H, W), jnp.float32)

    net = TripletNetPallas(D_in, HID, EMB, kp)     # f32 demo (bf16 on v6e/v7x)

    o1, o2, o3 = net(x1, x2, x3)
    e1 = net.get_embedding(x1)
    jax.block_until_ready((o1, o2, o3, e1))

    # Check against a pure-JAX reference of the same embedding net.
    r1, r2, r3 = _reference(net, x1, x2, x3)
    assert o1.shape == (B, EMB) and o2.shape == (B, EMB) and o3.shape == (B, EMB)
    assert jnp.allclose(o1, r1, atol=1e-4, rtol=1e-4)
    assert jnp.allclose(o2, r2, atol=1e-4, rtol=1e-4)
    assert jnp.allclose(o3, r3, atol=1e-4, rtol=1e-4)
    assert e1.shape == (B, EMB)
    assert jnp.allclose(e1, r1, atol=1e-4, rtol=1e-4)

    print("KERNEL_OK")
</pallas_src>

<mosaic_0001>
module attributes {stable_mosaic.version = 11 : i64} {
  func.func @_triplet_kernel(%arg0: memref<8x1024xf32, #tpu.memory_space<vmem>>, %arg1: memref<8x1024xf32, #tpu.memory_space<vmem>>, %arg2: memref<8x1024xf32, #tpu.memory_space<vmem>>, %arg3: memref<1024x128xf32, #tpu.memory_space<vmem>>, %arg4: memref<1x128xf32, #tpu.memory_space<vmem>>, %arg5: memref<128x128xf32, #tpu.memory_space<vmem>>, %arg6: memref<1x128xf32, #tpu.memory_space<vmem>>, %arg7: memref<24x128xf32, #tpu.memory_space<vmem>>) attributes {dimension_semantics = [], scalar_prefetch = 0 : i64, scratch_operands = 0 : i64, tpu.core_type = #tpu.core_type<tc>} {
    %c0 = arith.constant 0 : index
    %c0_0 = arith.constant 0 : index
    %0 = vector.load %arg0[%c0, %c0_0] : memref<8x1024xf32, #tpu.memory_space<vmem>>, vector<8x1024xf32>
    %c0_1 = arith.constant 0 : index
    %c0_2 = arith.constant 0 : index
    %1 = vector.load %arg1[%c0_1, %c0_2] : memref<8x1024xf32, #tpu.memory_space<vmem>>, vector<8x1024xf32>
    %c0_3 = arith.constant 0 : index
    %c0_4 = arith.constant 0 : index
    %2 = vector.load %arg2[%c0_3, %c0_4] : memref<8x1024xf32, #tpu.memory_space<vmem>>, vector<8x1024xf32>
    %3 = tpu.concatenate %0, %1, %2 in 0 : vector<8x1024xf32>, vector<8x1024xf32>, vector<8x1024xf32> -> vector<24x1024xf32>
    %c0_5 = arith.constant 0 : index
    %c0_6 = arith.constant 0 : index
    %4 = vector.load %arg3[%c0_5, %c0_6] : memref<1024x128xf32, #tpu.memory_space<vmem>>, vector<1024x128xf32>
    %cst = arith.constant dense<0.000000e+00> : vector<24x128xf32>
    %5 = tpu.matmul %3, %4, %cst {dimension_numbers = #tpu.dot_dimension_numbers<[1], [0], [0], [1], [0, 0, 1, 1], [], []>} : vector<24x1024xf32>, vector<1024x128xf32>, vector<24x128xf32> -> vector<24x128xf32>
    %c0_7 = arith.constant 0 : index
    %c0_8 = arith.constant 0 : index
    %6 = vector.load %arg4[%c0_7, %c0_8] : memref<1x128xf32, #tpu.memory_space<vmem>>, vector<1x128xf32>
    %7 = vector.broadcast %6 : vector<1x128xf32> to vector<24x128xf32>
    %8 = arith.addf %5, %7 : vector<24x128xf32>
    %cst_9 = arith.constant 0.000000e+00 : f32
    %9 = vector.broadcast %cst_9 : f32 to vector<24x128xf32>
    %10 = arith.maximumf %8, %9 : vector<24x128xf32>
    %c0_10 = arith.constant 0 : index
    %c0_11 = arith.constant 0 : index
    %11 = vector.load %arg5[%c0_10, %c0_11] : memref<128x128xf32, #tpu.memory_space<vmem>>, vector<128x128xf32>
    %cst_12 = arith.constant dense<0.000000e+00> : vector<24x128xf32>
    %12 = tpu.matmul %10, %11, %cst_12 {dimension_numbers = #tpu.dot_dimension_numbers<[1], [0], [0], [1], [0, 0, 1, 1], [], []>} : vector<24x128xf32>, vector<128x128xf32>, vector<24x128xf32> -> vector<24x128xf32>
    %c0_13 = arith.constant 0 : index
    %c0_14 = arith.constant 0 : index
    %13 = vector.load %arg6[%c0_13, %c0_14] : memref<1x128xf32, #tpu.memory_space<vmem>>, vector<1x128xf32>
    %14 = vector.broadcast %13 : vector<1x128xf32> to vector<24x128xf32>
    %15 = arith.addf %12, %14 : vector<24x128xf32>
    %c0_15 = arith.constant 0 : index
    %c0_16 = arith.constant 0 : index
    %16 = vector.load %arg7[%c0_15, %c0_16] : memref<24x128xf32, #tpu.memory_space<vmem>>, vector<24x128xf32>
    tpu.vector_store %arg7[%c0_15, %c0_16], %15 {strides = array<i32>} : memref<24x128xf32, #tpu.memory_space<vmem>>, vector<24x128xf32>,
    return
  }
}

</mosaic_0001>

<llo_original>
// kernel: tpu_custom_call.1
$region0: #{tpu_custom_call.1}
  #allocation0 [shape = 'u32[]', space=smem, size = 0x4, offset = 0x4, fixed_abs, tag = 'smem constant byte address 0x4 - core index']
  #allocation1 [shape = 'u32[144,128]{1,0:T(1,128)}', space=vmem, size = 0x12000, scoped, tag = 'internal scratch']
  %s0 = inlined_call_operand.hbm [shape: f32[8,1024], index: 0, kind: input, shape index: {}]
  %s1 = inlined_call_operand.hbm [shape: f32[8,1024], index: 1, kind: input, shape index: {}]
  %s2 = inlined_call_operand.hbm [shape: f32[8,1024], index: 2, kind: input, shape index: {}]
  %s3 = inlined_call_operand.hbm [shape: f32[1024,128], index: 3, kind: input, shape index: {}]
  %s4 = inlined_call_operand.vmem [shape: f32[1,128], index: 4, kind: input, shape index: {}]
  %s5 = inlined_call_operand.hbm [shape: f32[128,128], index: 5, kind: input, shape index: {}]
  %s6 = inlined_call_operand.vmem [shape: f32[1,128], index: 6, kind: input, shape index: {}]
  %s7 = inlined_call_operand.hbm [shape: f32[24,128], index: 7, kind: output, shape index: {}]
  %s8 = sld [smem:[#allocation0]]
  $region58: #{tpu_custom_call.1} parent=0
    _
  %s10 = ssub.s32 1, %s8
  %s11 = scalar_select 0, %s10, %s8
  $region1: #{tpu_custom_call.1} parent=0
    #allocation2 [shape = 'u8[32768]{0}', space=vmem, size = 0x8000, scoped, tag = 'input window, operand 0, single buffered']
    #allocation3 [shape = 's32[1]{0}', space=sflag, size = 0x4, scoped, tag = 'scoped memory for tpu_custom_call.1']
    #allocation4 [shape = 's32[1]{0}', space=sflag, size = 0x4, scoped, tag = 'scoped memory for tpu_custom_call.1']
    #allocation5 [shape = 'u8[32768]{0}', space=vmem, size = 0x8000, scoped, tag = 'input window, operand 1, single buffered']
    #allocation6 [shape = 's32[1]{0}', space=sflag, size = 0x4, scoped, tag = 'scoped memory for tpu_custom_call.1']
    #allocation7 [shape = 'u8[32768]{0}', space=vmem, size = 0x8000, scoped, tag = 'input window, operand 2, single buffered']
    #allocation8 [shape = 'u8[524288]{0}', space=vmem, size = 0x80000, scoped, tag = 'input window, operand 3, single buffered']
    #allocation9 [shape = 's32[1]{0}', space=sflag, size = 0x4, scoped, tag = 'scoped memory for tpu_custom_call.1']
    #allocation10 [shape = 'u8[65536]{0}', space=vmem, size = 0x10000, scoped, tag = 'input window, operand 5, single buffered']
    #allocation11 [shape = 'u8[12288]{0}', space=vmem, size = 0x3000, scoped, tag = 'output window, operand 0, single buffered']
    %12 = vsyncpa [#allocation3], 0
    %13 = vsyncpa [#allocation6], 0
    %14 = vsyncpa [#allocation9], 0
    %15 = vsyncpa [#allocation4], 0
    // Predicated region
    $region2: #{tpu_custom_call.1} parent=1 // pred_check
      _
    $region3: #{tpu_custom_call.1} parent=1 // pred_check_branch
      %17 = sbr.rel (0) target = $region5
    $region4: #{tpu_custom_call.1} parent=1 // pred_region
      %s19 = ssub.s32 1024, 1024
      %20 = vsyncadd [#allocation3], %s19
      %s22 = sshll.u32 [#allocation2], 4
      %s23 = int_to_ptr.vmem [resolvable:$true] %s22
      %25 = dma.hbm_to_vmem [thread:$0]  %s0, 1024, %s23, [#allocation3]
    $region5: #{tpu_custom_call.1} parent=1 // pred_fallthru
      _
    // Predicated region
    $region6: #{tpu_custom_call.1} parent=1 // pred_check
      _
    $region7: #{tpu_custom_call.1} parent=1 // pred_check_branch
      %27 = sbr.rel (0) target = $region9
    $region8: #{tpu_custom_call.1} parent=1 // pred_region
      %s29 = ssub.s32 1024, 1024
      %30 = vsyncadd [#allocation6], %s29
      %s32 = sshll.u32 [#allocation5], 4
      %s33 = int_to_ptr.vmem [resolvable:$true] %s32
      %35 = dma.hbm_to_vmem [thread:$0]  %s1, 1024, %s33, [#allocation6]
    $region9: #{tpu_custom_call.1} parent=1 // pred_fallthru
      _
    // Predicated region
    $region10: #{tpu_custom_call.1} parent=1 // pred_check
      _
    $region11: #{tpu_custom_call.1} parent=1 // pred_check_branch
      %37 = sbr.rel (0) target = $region13
    $region12: #{tpu_custom_call.1} parent=1 // pred_region
      %s39 = ssub.s32 1024, 1024
      %40 = vsyncadd [#allocation6], %s39
      %s42 = sshll.u32 [#allocation7], 4
      %s43 = int_to_ptr.vmem [resolvable:$true] %s42
      %45 = dma.hbm_to_vmem [thread:$0]  %s2, 1024, %s43, [#allocation6]
    $region13: #{tpu_custom_call.1} parent=1 // pred_fallthru
      _
    // Predicated region
    $region14: #{tpu_custom_call.1} parent=1 // pred_check
      _
    $region15: #{tpu_custom_call.1} parent=1 // pred_check_branch
      %47 = sbr.rel (0) target = $region17
    $region16: #{tpu_custom_call.1} parent=1 // pred_region
      %s49 = ssub.s32 16384, 16384
      %50 = vsyncadd [#allocation9], %s49
      %s51 = sshll.u32 [#allocation8], 4
      %s52 = int_to_ptr.vmem [resolvable:$true] %s51
      %57 = dma.hbm_to_vmem [thread:$0]  %s3, 16384, %s52, [#allocation9], 128, 128, 8
    $region17: #{tpu_custom_call.1} parent=1 // pred_fallthru
      _
    // Predicated region
    $region18: #{tpu_custom_call.1} parent=1 // pred_check
      _
    $region19: #{tpu_custom_call.1} parent=1 // pred_check_branch
      %59 = sbr.rel (0) target = $region21
    $region20: #{tpu_custom_call.1} parent=1 // pred_region
      _
    $region21: #{tpu_custom_call.1} parent=1 // pred_fallthru
      _
    // Predicated region
    $region22: #{tpu_custom_call.1} parent=1 // pred_check
      _
    $region23: #{tpu_custom_call.1} parent=1 // pred_check_branch
      %61 = sbr.rel (0) target = $region25
    $region24: #{tpu_custom_call.1} parent=1 // pred_region
      %s63 = ssub.s32 2048, 2048
      %64 = vsyncadd [#allocation9], %s63
      %s65 = sshll.u32 [#allocation10], 4
      %s66 = int_to_ptr.vmem [resolvable:$true] %s65
      %71 = dma.hbm_to_vmem [thread:$0]  %s5, 2048, %s66, [#allocation9], 128, 128, 8
    $region25: #{tpu_custom_call.1} parent=1 // pred_fallthru
      _
    // Predicated region
    $region26: #{tpu_custom_call.1} parent=1 // pred_check
      _
    $region27: #{tpu_custom_call.1} parent=1 // pred_check_branch
      %73 = sbr.rel (0) target = $region29
    $region28: #{tpu_custom_call.1} parent=1 // pred_region
      _
    $region29: #{tpu_custom_call.1} parent=1 // pred_fallthru
      _
    // Predicated region
    $region30: #{tpu_custom_call.1} parent=1 // pred_check
      _
    $region31: #{tpu_custom_call.1} parent=1 // pred_check_branch
      %75 = sbr.rel (0) target = $region33
    $region32: #{tpu_custom_call.1} parent=1 // pred_region
      %76 = dma.done [#allocation3], 1024
    $region33: #{tpu_custom_call.1} parent=1 // pred_fallthru
      _
    // Predicated region
    $region34: #{tpu_custom_call.1} parent=1 // pred_check
      _
    $region35: #{tpu_custom_call.1} parent=1 // pred_check_branch
      %78 = sbr.rel (0) target = $region37
    $region36: #{tpu_custom_call.1} parent=1 // pred_region
      %79 = dma.done [#allocation6], 1024
    $region37: #{tpu_custom_call.1} parent=1 // pred_fallthru
      _
    // Predicated region
    $region38: #{tpu_custom_call.1} parent=1 // pred_check
      _
    $region39: #{tpu_custom_call.1} parent=1 // pred_check_branch
      %81 = sbr.rel (0) target = $region41
    $region40: #{tpu_custom_call.1} parent=1 // pred_region
      %82 = dma.done [#allocation6], 1024
    $region41: #{tpu_custom_call.1} parent=1 // pred_fallthru
      _
    // Predicated region
    $region42: #{tpu_custom_call.1} parent=1 // pred_check
      _
    $region43: #{tpu_custom_call.1} parent=1 // pred_check_branch
      %84 = sbr.rel (0) target = $region45
    $region44: #{tpu_custom_call.1} parent=1 // pred_region
      %85 = dma.done [#allocation9], 16384
    $region45: #{tpu_custom_call.1} parent=1 // pred_fallthru
      _
    // Predicated region
    $region46: #{tpu_custom_call.1} parent=1 // pred_check
      _
    $region47: #{tpu_custom_call.1} parent=1 // pred_check_branch
      %87 = sbr.rel (0) target = $region49
    $region48: #{tpu_custom_call.1} parent=1 // pred_region
      %88 = dma.done [#allocation9], 2048
    $region49: #{tpu_custom_call.1} parent=1 // pred_fallthru
      _
    %v89 = vld [vmem:[#allocation2] sm:$0xff]
    %v90 = vld [vmem:[#allocation2 + $0x8] sm:$0xff]
    %v91 = vld [vmem:[#allocation2 + $0x10] sm:$0xff]
    %v92 = vld [vmem:[#allocation2 + $0x18] sm:$0xff]
    %v93 = vld [vmem:[#allocation2 + $0x20] sm:$0xff]
    %v94 = vld [vmem:[#allocation2 + $0x28] sm:$0xff]
    %v95 = vld [vmem:[#allocation2 + $0x30] sm:$0xff]
    %v96 = vld [vmem:[#allocation2 + $0x38] sm:$0xff]
    %v97 = vld [vmem:[#allocation5] sm:$0xff]
    %v98 = vld [vmem:[#allocation5 + $0x8] sm:$0xff]
    %v99 = vld [vmem:[#allocation5 + $0x10] sm:$0xff]
    %v100 = vld [vmem:[#allocation5 + $0x18] sm:$0xff]
    %v101 = vld [vmem:[#allocation5 + $0x20] sm:$0xff]
    %v102 = vld [vmem:[#allocation5 + $0x28] sm:$0xff]
    %v103 = vld [vmem:[#allocation5 + $0x30] sm:$0xff]
    %v104 = vld [vmem:[#allocation5 + $0x38] sm:$0xff]
    %v105 = vld [vmem:[#allocation7] sm:$0xff]
    %v106 = vld [vmem:[#allocation7 + $0x8] sm:$0xff]
    %v107 = vld [vmem:[#allocation7 + $0x10] sm:$0xff]
    %v108 = vld [vmem:[#allocation7 + $0x18] sm:$0xff]
    %v109 = vld [vmem:[#allocation7 + $0x20] sm:$0xff]
    %v110 = vld [vmem:[#allocation7 + $0x28] sm:$0xff]
    %v111 = vld [vmem:[#allocation7 + $0x30] sm:$0xff]
    %v112 = vld [vmem:[#allocation7 + $0x38] sm:$0xff]
    %v113 = vld [vmem:[#allocation8] sm:$0xff]
    %v114 = vld [vmem:[#allocation8 + $0x8] sm:$0xff]
    %v115 = vld [vmem:[#allocation8 + $0x10] sm:$0xff]
    %v116 = vld [vmem:[#allocation8 + $0x18] sm:$0xff]
    %v117 = vld [vmem:[#allocation8 + $0x20] sm:$0xff]
    %v118 = vld [vmem:[#allocation8 + $0x28] sm:$0xff]
    %v119 = vld [vmem:[#allocation8 + $0x30] sm:$0xff]
    %v120 = vld [vmem:[#allocation8 + $0x38] sm:$0xff]
    %v121 = vld [vmem:[#allocation8 + $0x40] sm:$0xff]
    %v122 = vld [vmem:[#allocation8 + $0x48] sm:$0xff]
    %v123 = vld [vmem:[#allocation8 + $0x50] sm:$0xff]
    %v124 = vld [vmem:[#allocation8 + $0x58] sm:$0xff]
    %v125 = vld [vmem:[#allocation8 + $0x60] sm:$0xff]
    %v126 = vld [vmem:[#allocation8 + $0x68] sm:$0xff]
    %v127 = vld [vmem:[#allocation8 + $0x70] sm:$0xff]
    %v128 = vld [vmem:[#allocation8 + $0x78] sm:$0xff]
    %v129 = vld [vmem:[#allocation8 + $0x80] sm:$0xff]
    %v130 = vld [vmem:[#allocation8 + $0x88] sm:$0xff]
    %v131 = vld [vmem:[#allocation8 + $0x90] sm:$0xff]
    %v132 = vld [vmem:[#allocation8 + $0x98] sm:$0xff]
    %v133 = vld [vmem:[#allocation8 + $0xa0] sm:$0xff]
    %v134 = vld [vmem:[#allocation8 + $0xa8] sm:$0xff]
    %v135 = vld [vmem:[#allocation8 + $0xb0] sm:$0xff]
    %v136 = vld [vmem:[#allocation8 + $0xb8] sm:$0xff]
    %v137 = vld [vmem:[#allocation8 + $0xc0] sm:$0xff]
    %v138 = vld [vmem:[#allocation8 + $0xc8] sm:$0xff]
    %v139 = vld [vmem:[#allocation8 + $0xd0] sm:$0xff]
    %v140 = vld [vmem:[#allocation8 + $0xd8] sm:$0xff]
    %v141 = vld [vmem:[#allocation8 + $0xe0] sm:$0xff]
    %v142 = vld [vmem:[#allocation8 + $0xe8] sm:$0xff]
    %v143 = vld [vmem:[#allocation8 + $0xf0] sm:$0xff]
    %v144 = vld [vmem:[#allocation8 + $0xf8] sm:$0xff]
    %v145 = vld [vmem:[#allocation8 + $0x100] sm:$0xff]
    %v146 = vld [vmem:[#allocation8 + $0x108] sm:$0xff]
    %v147 = vld [vmem:[#allocation8 + $0x110] sm:$0xff]
    %v148 = vld [vmem:[#allocation8 + $0x118] sm:$0xff]
    %v149 = vld [vmem:[#allocation8 + $0x120] sm:$0xff]
    %v150 = vld [vmem:[#allocation8 + $0x128] sm:$0xff]
    %v151 = vld [vmem:[#allocation8 + $0x130] sm:$0xff]
    %v152 = vld [vmem:[#allocation8 + $0x138] sm:$0xff]
    %v153 = vld [vmem:[#allocation8 + $0x140] sm:$0xff]
    %v154 = vld [vmem:[#allocation8 + $0x148] sm:$0xff]
    %v155 = vld [vmem:[#allocation8 + $0x150] sm:$0xff]
    %v156 = vld [vmem:[#allocation8 + $0x158] sm:$0xff]
    %v157 = vld [vmem:[#allocation8 + $0x160] sm:$0xff]
    %v158 = vld [vmem:[#allocation8 + $0x168] sm:$0xff]
    %v159 = vld [vmem:[#allocation8 + $0x170] sm:$0xff]
    %v160 = vld [vmem:[#allocation8 + $0x178] sm:$0xff]
    %v161 = vld [vmem:[#allocation8 + $0x180] sm:$0xff]
    %v162 = vld [vmem:[#allocation8 + $0x188] sm:$0xff]
    %v163 = vld [vmem:[#allocation8 + $0x190] sm:$0xff]
    %v164 = vld [vmem:[#allocation8 + $0x198] sm:$0xff]
    %v165 = vld [vmem:[#allocation8 + $0x1a0] sm:$0xff]
    %v166 = vld [vmem:[#allocation8 + $0x1a8] sm:$0xff]
    %v167 = vld [vmem:[#allocation8 + $0x1b0] sm:$0xff]
    %v168 = vld [vmem:[#allocation8 + $0x1b8] sm:$0xff]
    %v169 = vld [vmem:[#allocation8 + $0x1c0] sm:$0xff]
    %v170 = vld [vmem:[#allocation8 + $0x1c8] sm:$0xff]
    %v171 = vld [vmem:[#allocation8 + $0x1d0] sm:$0xff]
    %v172 = vld [vmem:[#allocation8 + $0x1d8] sm:$0xff]
    %v173 = vld [vmem:[#allocation8 + $0x1e0] sm:$0xff]
    %v174 = vld [vmem:[#allocation8 + $0x1e8] sm:$0xff]
    %v175 = vld [vmem:[#allocation8 + $0x1f0] sm:$0xff]
    %v176 = vld [vmem:[#allocation8 + $0x1f8] sm:$0xff]
    %v177 = vld [vmem:[#allocation8 + $0x200] sm:$0xff]
    %v178 = vld [vmem:[#allocation8 + $0x208] sm:$0xff]
    %v179 = vld [vmem:[#allocation8 + $0x210] sm:$0xff]
    %v180 = vld [vmem:[#allocation8 + $0x218] sm:$0xff]
    %v181 = vld [vmem:[#allocation8 + $0x220] sm:$0xff]
    %v182 = vld [vmem:[#allocation8 + $0x228] sm:$0xff]
    %v183 = vld [vmem:[#allocation8 + $0x230] sm:$0xff]
    %v184 = vld [vmem:[#allocation8 + $0x238] sm:$0xff]
    %v185 = vld [vmem:[#allocation8 + $0x240] sm:$0xff]
    %v186 = vld [vmem:[#allocation8 + $0x248] sm:$0xff]
    %v187 = vld [vmem:[#allocation8 + $0x250] sm:$0xff]
    %v188 = vld [vmem:[#allocation8 + $0x258] sm:$0xff]
    %v189 = vld [vmem:[#allocation8 + $0x260] sm:$0xff]
    %v190 = vld [vmem:[#allocation8 + $0x268] sm:$0xff]
    %v191 = vld [vmem:[#allocation8 + $0x270] sm:$0xff]
    %v192 = vld [vmem:[#allocation8 + $0x278] sm:$0xff]
    %v193 = vld [vmem:[#allocation8 + $0x280] sm:$0xff]
    %v194 = vld [vmem:[#allocation8 + $0x288] sm:$0xff]
    %v195 = vld [vmem:[#allocation8 + $0x290] sm:$0xff]
    %v196 = vld [vmem:[#allocation8 + $0x298] sm:$0xff]
    %v197 = vld [vmem:[#allocation8 + $0x2a0] sm:$0xff]
    %v198 = vld [vmem:[#allocation8 + $0x2a8] sm:$0xff]
    %v199 = vld [vmem:[#allocation8 + $0x2b0] sm:$0xff]
    %v200 = vld [vmem:[#allocation8 + $0x2b8] sm:$0xff]
    %v201 = vld [vmem:[#allocation8 + $0x2c0] sm:$0xff]
    %v202 = vld [vmem:[#allocation8 + $0x2c8] sm:$0xff]
    %v203 = vld [vmem:[#allocation8 + $0x2d0] sm:$0xff]
    %v204 = vld [vmem:[#allocation8 + $0x2d8] sm:$0xff]
    %v205 = vld [vmem:[#allocation8 + $0x2e0] sm:$0xff]
    %v206 = vld [vmem:[#allocation8 + $0x2e8] sm:$0xff]
    %v207 = vld [vmem:[#allocation8 + $0x2f0] sm:$0xff]
    %v208 = vld [vmem:[#allocation8 + $0x2f8] sm:$0xff]
    %v209 = vld [vmem:[#allocation8 + $0x300] sm:$0xff]
    %v210 = vld [vmem:[#allocation8 + $0x308] sm:$0xff]
    %v211 = vld [vmem:[#allocation8 + $0x310] sm:$0xff]
    %v212 = vld [vmem:[#allocation8 + $0x318] sm:$0xff]
    %v213 = vld [vmem:[#allocation8 + $0x320] sm:$0xff]
    %v214 = vld [vmem:[#allocation8 + $0x328] sm:$0xff]
    %v215 = vld [vmem:[#allocation8 + $0x330] sm:$0xff]
    %v216 = vld [vmem:[#allocation8 + $0x338] sm:$0xff]
    %v217 = vld [vmem:[#allocation8 + $0x340] sm:$0xff]
    %v218 = vld [vmem:[#allocation8 + $0x348] sm:$0xff]
    %v219 = vld [vmem:[#allocation8 + $0x350] sm:$0xff]
    %v220 = vld [vmem:[#allocation8 + $0x358] sm:$0xff]
    %v221 = vld [vmem:[#allocation8 + $0x360] sm:$0xff]
    %v222 = vld [vmem:[#allocation8 + $0x368] sm:$0xff]
    %v223 = vld [vmem:[#allocation8 + $0x370] sm:$0xff]
    %v224 = vld [vmem:[#allocation8 + $0x378] sm:$0xff]
    %v225 = vld [vmem:[#allocation8 + $0x380] sm:$0xff]
    %v226 = vld [vmem:[#allocation8 + $0x388] sm:$0xff]
    %v227 = vld [vmem:[#allocation8 + $0x390] sm:$0xff]
    %v228 = vld [vmem:[#allocation8 + $0x398] sm:$0xff]
    %v229 = vld [vmem:[#allocation8 + $0x3a0] sm:$0xff]
    %v230 = vld [vmem:[#allocation8 + $0x3a8] sm:$0xff]
    %v231 = vld [vmem:[#allocation8 + $0x3b0] sm:$0xff]
    %v232 = vld [vmem:[#allocation8 + $0x3b8] sm:$0xff]
    %v233 = vld [vmem:[#allocation8 + $0x3c0] sm:$0xff]
    %v234 = vld [vmem:[#allocation8 + $0x3c8] sm:$0xff]
    %v235 = vld [vmem:[#allocation8 + $0x3d0] sm:$0xff]
    %v236 = vld [vmem:[#allocation8 + $0x3d8] sm:$0xff]
    %v237 = vld [vmem:[#allocation8 + $0x3e0] sm:$0xff]
    %v238 = vld [vmem:[#allocation8 + $0x3e8] sm:$0xff]
    %v239 = vld [vmem:[#allocation8 + $0x3f0] sm:$0xff]
    %v240 = vld [vmem:[#allocation8 + $0x3f8] sm:$0xff]
    %v241 = vld [vmem:[%s4] sm:$0x1]
    %v243 = vlaneseq
    %v244 = vshrl.u32 %v243, 7
    %v245 = vsub.s32 0, %v244
    %v246 = vrot.slane %v241, %v245
    %248 = vmatprep.subr.mxu0 0.0
    %249 = vmatpush1.msra.mxu0 %v113
    %250 = vmatprep.subr.mxu0 0.0
    %251 = vmatpush1.msra.mxu0 %v114
    %252 = vmatprep.subr.mxu0 0.0
    %253 = vmatpush1.msra.mxu0 %v115
    %254 = vmatprep.subr.mxu0 0.0
    %255 = vmatpush1.msra.mxu0 %v116
    %256 = vmatprep.subr.mxu0 0.0
    %257 = vmatpush1.msra.mxu0 %v117
    %258 = vmatprep.subr.mxu0 0.0
    %259 = vmatpush1.msra.mxu0 %v118
    %260 = vmatprep.subr.mxu0 0.0
    %261 = vmatpush1.msra.mxu0 %v119
    %262 = vmatprep.subr.mxu0 0.0
    %263 = vmatpush1.msra.mxu0 %v120
    %264 = vmatprep.subr.mxu0 0.0
    %265 = vmatpush1.msra.mxu0 %v121
    %266 = vmatprep.subr.mxu0 0.0
    %267 = vmatpush1.msra.mxu0 %v122
    %268 = vmatprep.subr.mxu0 0.0
    %269 = vmatpush1.msra.mxu0 %v123
    %270 = vmatprep.subr.mxu0 0.0
    %271 = vmatpush1.msra.mxu0 %v124
    %272 = vmatprep.subr.mxu0 0.0
    %273 = vmatpush1.msra.mxu0 %v125
    %274 = vmatprep.subr.mxu0 0.0
    %275 = vmatpush1.msra.mxu0 %v126
    %276 = vmatprep.subr.mxu0 0.0
    %277 = vmatpush1.msra.mxu0 %v127
    %278 = vmatprep.subr.mxu0 0.0
    %279 = vmatpush1.msra.mxu0 %v128
    %280 = vmatprep.subr.mxu0 0.0
    %281 = vmatpush1.msra.mxu0 %v129
    %282 = vmatprep.subr.mxu0 0.0
    %283 = vmatpush1.msra.mxu0 %v130
    %284 = vmatprep.subr.mxu0 0.0
    %285 = vmatpush1.msra.mxu0 %v131
    %286 = vmatprep.subr.mxu0 0.0
    %287 = vmatpush1.msra.mxu0 %v132
    %288 = vmatprep.subr.mxu0 0.0
    %289 = vmatpush1.msra.mxu0 %v133
    %290 = vmatprep.subr.mxu0 0.0
    %291 = vmatpush1.msra.mxu0 %v134
    %292 = vmatprep.subr.mxu0 0.0
    %293 = vmatpush1.msra.mxu0 %v135
    %294 = vmatprep.subr.mxu0 0.0
    %295 = vmatpush1.msra.mxu0 %v136
    %296 = vmatprep.subr.mxu0 0.0
    %297 = vmatpush1.msra.mxu0 %v137
    %298 = vmatprep.subr.mxu0 0.0
    %299 = vmatpush1.msra.mxu0 %v138
    %300 = vmatprep.subr.mxu0 0.0
    %301 = vmatpush1.msra.mxu0 %v139
    %302 = vmatprep.subr.mxu0 0.0
    %303 = vmatpush1.msra.mxu0 %v140
    %304 = vmatprep.subr.mxu0 0.0
    %305 = vmatpush1.msra.mxu0 %v141
    %306 = vmatprep.subr.mxu0 0.0
    %307 = vmatpush1.msra.mxu0 %v142
    %308 = vmatprep.subr.mxu0 0.0
    %309 = vmatpush1.msra.mxu0 %v143
    %310 = vmatprep.subr.mxu0 0.0
    %311 = vmatpush1.msra.mxu0 %v144
    %312 = vmatprep.mubr.f32.mxu0 %v90
    %313 = vmatmul.mubr.f32.gmra.mrb[0].mxu0 %v89
    %v314 = vpop.f32.mrb[0].mxu0
    %v315 = vadd.f32 %v246, %v314
    %v316 = vpop.f32.mrb[0].mxu0
    %317 = vmatprep.mubr.f32.mxu0 %v98
    %318 = vmatmul.mubr.f32.gmra.mrb[0].mxu0 %v97
    %v319 = vpop.f32.mrb[0].mxu0
    %v320 = vadd.f32 %v246, %v319
    %v321 = vpop.f32.mrb[0].mxu0
    %322 = vmatprep.mubr.f32.mxu0 %v106
    %323 = vmatmul.mubr.f32.gmra.mrb[0].mxu0 %v105
    %v324 = vpop.f32.mrb[0].mxu0
    %v325 = vadd.f32 %v246, %v324
    %v326 = vpop.f32.mrb[0].mxu0
    %327 = vdwg.mxu0
    %328 = vmatprep.subr.mxu0 0.0
    %329 = vmatpush1.msra.mxu0 %v145
    %330 = vmatprep.subr.mxu0 0.0
    %331 = vmatpush1.msra.mxu0 %v146
    %332 = vmatprep.subr.mxu0 0.0
    %333 = vmatpush1.msra.mxu0 %v147
    %334 = vmatprep.subr.mxu0 0.0
    %335 = vmatpush1.msra.mxu0 %v148
    %336 = vmatprep.subr.mxu0 0.0
    %337 = vmatpush1.msra.mxu0 %v149
    %338 = vmatprep.subr.mxu0 0.0
    %339 = vmatpush1.msra.mxu0 %v150
    %340 = vmatprep.subr.mxu0 0.0
    %341 = vmatpush1.msra.mxu0 %v151
    %342 = vmatprep.subr.mxu0 0.0
    %343 = vmatpush1.msra.mxu0 %v152
    %344 = vmatprep.subr.mxu0 0.0
    %345 = vmatpush1.msra.mxu0 %v153
    %346 = vmatprep.subr.mxu0 0.0
    %347 = vmatpush1.msra.mxu0 %v154
    %348 = vmatprep.subr.mxu0 0.0
    %349 = vmatpush1.msra.mxu0 %v155
    %350 = vmatprep.subr.mxu0 0.0
    %351 = vmatpush1.msra.mxu0 %v156
    %352 = vmatprep.subr.mxu0 0.0
    %353 = vmatpush1.msra.mxu0 %v157
    %354 = vmatprep.subr.mxu0 0.0
    %355 = vmatpush1.msra.mxu0 %v158
    %356 = vmatprep.subr.mxu0 0.0
    %357 = vmatpush1.msra.mxu0 %v159
    %358 = vmatprep.subr.mxu0 0.0
    %359 = vmatpush1.msra.mxu0 %v160
    %360 = vmatprep.subr.mxu0 0.0
    %361 = vmatpush1.msra.mxu0 %v161
    %362 = vmatprep.subr.mxu0 0.0
    %363 = vmatpush1.msra.mxu0 %v162
    %364 = vmatprep.subr.mxu0 0.0
    %365 = vmatpush1.msra.mxu0 %v163
    %366 = vmatprep.subr.mxu0 0.0
    %367 = vmatpush1.msra.mxu0 %v164
    %368 = vmatprep.subr.mxu0 0.0
    %369 = vmatpush1.msra.mxu0 %v165
    %370 = vmatprep.subr.mxu0 0.0
    %371 = vmatpush1.msra.mxu0 %v166
    %372 = vmatprep.subr.mxu0 0.0
    %373 = vmatpush1.msra.mxu0 %v167
    %374 = vmatprep.subr.mxu0 0.0
    %375 = vmatpush1.msra.mxu0 %v168
    %376 = vmatprep.subr.mxu0 0.0
    %377 = vmatpush1.msra.mxu0 %v169
    %378 = vmatprep.subr.mxu0 0.0
    %379 = vmatpush1.msra.mxu0 %v170
    %380 = vmatprep.subr.mxu0 0.0
    %381 = vmatpush1.msra.mxu0 %v171
    %382 = vmatprep.subr.mxu0 0.0
    %383 = vmatpush1.msra.mxu0 %v172
    %384 = vmatprep.subr.mxu0 0.0
    %385 = vmatpush1.msra.mxu0 %v173
    %386 = vmatprep.subr.mxu0 0.0
    %387 = vmatpush1.msra.mxu0 %v174
    %388 = vmatprep.subr.mxu0 0.0
    %389 = vmatpush1.msra.mxu0 %v175
    %390 = vmatprep.subr.mxu0 0.0
    %391 = vmatpush1.msra.mxu0 %v176
    %392 = vmatprep.mubr.f32.mxu0 %v92
    %393 = vmatmul.mubr.f32.gmra.mrb[0].mxu0 %v91
    %v394 = vpop.f32.mrb[0].mxu0
    %v395 = vadd.f32 %v315, %v394
    %v396 = vpop.f32.mrb[0].mxu0
    %397 = vmatprep.mubr.f32.mxu0 %v100
    %398 = vmatmul.mubr.f32.gmra.mrb[0].mxu0 %v99
    %v399 = vpop.f32.mrb[0].mxu0
    %v400 = vadd.f32 %v320, %v399
    %v401 = vpop.f32.mrb[0].mxu0
    %402 = vmatprep.mubr.f32.mxu0 %v108
    %403 = vmatmul.mubr.f32.gmra.mrb[0].mxu0 %v107
    %v404 = vpop.f32.mrb[0].mxu0
    %v405 = vadd.f32 %v325, %v404
    %v406 = vpop.f32.mrb[0].mxu0
    %407 = vdwg.mxu0
    %408 = vmatprep.subr.mxu0 0.0
    %409 = vmatpush1.msra.mxu0 %v177
    %410 = vmatprep.subr.mxu0 0.0
    %411 = vmatpush1.msra.mxu0 %v178
    %412 = vmatprep.subr.mxu0 0.0
    %413 = vmatpush1.msra.mxu0 %v179
    %414 = vmatprep.subr.mxu0 0.0
    %415 = vmatpush1.msra.mxu0 %v180
    %416 = vmatprep.subr.mxu0 0.0
    %417 = vmatpush1.msra.mxu0 %v181
    %418 = vmatprep.subr.mxu0 0.0
    %419 = vmatpush1.msra.mxu0 %v182
    %420 = vmatprep.subr.mxu0 0.0
    %421 = vmatpush1.msra.mxu0 %v183
    %422 = vmatprep.subr.mxu0 0.0
    %423 = vmatpush1.msra.mxu0 %v184
    %424 = vmatprep.subr.mxu0 0.0
    %425 = vmatpush1.msra.mxu0 %v185
    %426 = vmatprep.subr.mxu0 0.0
    %427 = vmatpush1.msra.mxu0 %v186
    %428 = vmatprep.subr.mxu0 0.0
    %429 = vmatpush1.msra.mxu0 %v187
    %430 = vmatprep.subr.mxu0 0.0
    %431 = vmatpush1.msra.mxu0 %v188
    %432 = vmatprep.subr.mxu0 0.0
    %433 = vmatpush1.msra.mxu0 %v189
    %434 = vmatprep.subr.mxu0 0.0
    %435 = vmatpush1.msra.mxu0 %v190
    %436 = vmatprep.subr.mxu0 0.0
    %437 = vmatpush1.msra.mxu0 %v191
    %438 = vmatprep.subr.mxu0 0.0
    %439 = vmatpush1.msra.mxu0 %v192
    %440 = vmatprep.subr.mxu0 0.0
    %441 = vmatpush1.msra.mxu0 %v193
    %442 = vmatprep.subr.mxu0 0.0
    %443 = vmatpush1.msra.mxu0 %v194
    %444 = vmatprep.subr.mxu0 0.0
    %445 = vmatpush1.msra.mxu0 %v195
    %446 = vmatprep.subr.mxu0 0.0
    %447 = vmatpush1.msra.mxu0 %v196
    %448 = vmatprep.subr.mxu0 0.0
    %449 = vmatpush1.msra.mxu0 %v197
    %450 = vmatprep.subr.mxu0 0.0
    %451 = vmatpush1.msra.mxu0 %v198
    %452 = vmatprep.subr.mxu0 0.0
    %453 = vmatpush1.msra.mxu0 %v199
    %454 = vmatprep.subr.mxu0 0.0
    %455 = vmatpush1.msra.mxu0 %v200
    %456 = vmatprep.subr.mxu0 0.0
    %457 = vmatpush1.msra.mxu0 %v201
    %458 = vmatprep.subr.mxu0 0.0
    %459 = vmatpush1.msra.mxu0 %v202
    %460 = vmatprep.subr.mxu0 0.0
    %461 = vmatpush1.msra.mxu0 %v203
    %462 = vmatprep.subr.mxu0 0.0
    %463 = vmatpush1.msra.mxu0 %v204
    %464 = vmatprep.subr.mxu0 0.0
    %465 = vmatpush1.msra.mxu0 %v205
    %466 = vmatprep.subr.mxu0 0.0
    %467 = vmatpush1.msra.mxu0 %v206
    %468 = vmatprep.subr.mxu0 0.0
    %469 = vmatpush1.msra.mxu0 %v207
    %470 = vmatprep.subr.mxu0 0.0
    %471 = vmatpush1.msra.mxu0 %v208
    %472 = vmatprep.mubr.f32.mxu0 %v94
    %473 = vmatmul.mubr.f32.gmra.mrb[0].mxu0 %v93
    %v474 = vpop.f32.mrb[0].mxu0
    %v475 = vadd.f32 %v395, %v474
    %v476 = vpop.f32.mrb[0].mxu0
    %477 = vmatprep.mubr.f32.mxu0 %v102
    %478 = vmatmul.mubr.f32.gmra.mrb[0].mxu0 %v101
    %v479 = vpop.f32.mrb[0].mxu0
    %v480 = vadd.f32 %v400, %v479
    %v481 = vpop.f32.mrb[0].mxu0
    %482 = vmatprep.mubr.f32.mxu0 %v110
    %483 = vmatmul.mubr.f32.gmra.mrb[0].mxu0 %v109
    %v484 = vpop.f32.mrb[0].mxu0
    %v485 = vadd.f32 %v405, %v484
    %v486 = vpop.f32.mrb[0].mxu0
    %487 = vdwg.mxu0
    %488 = vmatprep.subr.mxu0 0.0
    %489 = vmatpush1.msra.mxu0 %v209
    %490 = vmatprep.subr.mxu0 0.0
    %491 = vmatpush1.msra.mxu0 %v210
    %492 = vmatprep.subr.mxu0 0.0
    %493 = vmatpush1.msra.mxu0 %v211
    %494 = vmatprep.subr.mxu0 0.0
    %495 = vmatpush1.msra.mxu0 %v212
    %496 = vmatprep.subr.mxu0 0.0
    %497 = vmatpush1.msra.mxu0 %v213
    %498 = vmatprep.subr.mxu0 0.0
    %499 = vmatpush1.msra.mxu0 %v214
    %500 = vmatprep.subr.mxu0 0.0
    %501 = vmatpush1.msra.mxu0 %v215
    %502 = vmatprep.subr.mxu0 0.0
    %503 = vmatpush1.msra.mxu0 %v216
    %504 = vmatprep.subr.mxu0 0.0
    %505 = vmatpush1.msra.mxu0 %v217
    %506 = vmatprep.subr.mxu0 0.0
    %507 = vmatpush1.msra.mxu0 %v218
    %508 = vmatprep.subr.mxu0 0.0
    %509 = vmatpush1.msra.mxu0 %v219
    %510 = vmatprep.subr.mxu0 0.0
    %511 = vmatpush1.msra.mxu0 %v220
    %512 = vmatprep.subr.mxu0 0.0
    %513 = vmatpush1.msra.mxu0 %v221
    %514 = vmatprep.subr.mxu0 0.0
    %515 = vmatpush1.msra.mxu0 %v222
    %516 = vmatprep.subr.mxu0 0.0
    %517 = vmatpush1.msra.mxu0 %v223
    %518 = vmatprep.subr.mxu0 0.0
    %519 = vmatpush1.msra.mxu0 %v224
    %520 = vmatprep.subr.mxu0 0.0
    %521 = vmatpush1.msra.mxu0 %v225
    %522 = vmatprep.subr.mxu0 0.0
    %523 = vmatpush1.msra.mxu0 %v226
    %524 = vmatprep.subr.mxu0 0.0
    %525 = vmatpush1.msra.mxu0 %v227
    %526 = vmatprep.subr.mxu0 0.0
    %527 = vmatpush1.msra.mxu0 %v228
    %528 = vmatprep.subr.mxu0 0.0
    %529 = vmatpush1.msra.mxu0 %v229
    %530 = vmatprep.subr.mxu0 0.0
    %531 = vmatpush1.msra.mxu0 %v230
    %532 = vmatprep.subr.mxu0 0.0
    %533 = vmatpush1.msra.mxu0 %v231
    %534 = vmatprep.subr.mxu0 0.0
    %535 = vmatpush1.msra.mxu0 %v232
    %536 = vmatprep.subr.mxu0 0.0
    %537 = vmatpush1.msra.mxu0 %v233
    %538 = vmatprep.subr.mxu0 0.0
    %539 = vmatpush1.msra.mxu0 %v234
    %540 = vmatprep.subr.mxu0 0.0
    %541 = vmatpush1.msra.mxu0 %v235
    %542 = vmatprep.subr.mxu0 0.0
    %543 = vmatpush1.msra.mxu0 %v236
    %544 = vmatprep.subr.mxu0 0.0
    %545 = vmatpush1.msra.mxu0 %v237
    %546 = vmatprep.subr.mxu0 0.0
    %547 = vmatpush1.msra.mxu0 %v238
    %548 = vmatprep.subr.mxu0 0.0
    %549 = vmatpush1.msra.mxu0 %v239
    %550 = vmatprep.subr.mxu0 0.0
    %551 = vmatpush1.msra.mxu0 %v240
    %552 = vmatprep.mubr.f32.mxu0 %v96
    %553 = vmatmul.mubr.f32.gmra.mrb[0].mxu0 %v95
    %v554 = vpop.f32.mrb[0].mxu0
    %v555 = vadd.f32 %v475, %v554
    %v556 = vpop.f32.mrb[0].mxu0
    %557 = vmatprep.mubr.f32.mxu0 %v104
    %558 = vmatmul.mubr.f32.gmra.mrb[0].mxu0 %v103
    %v559 = vpop.f32.mrb[0].mxu0
    %v560 = vadd.f32 %v480, %v559
    %v561 = vpop.f32.mrb[0].mxu0
    %562 = vmatprep.mubr.f32.mxu0 %v112
    %563 = vmatmul.mubr.f32.gmra.mrb[0].mxu0 %v111
    %v564 = vpop.f32.mrb[0].mxu0
    %v565 = vadd.f32 %v485, %v564
    %v566 = vpop.f32.mrb[0].mxu0
    %567 = vdwg.mxu0
    %v568 = vmax.f32 %v555, 0.0
    %v569 = vmax.f32 %v560, 0.0
    %v570 = vmax.f32 %v565, 0.0
    %v571 = vld [vmem:[#allocation10] sm:$0xff]
    %v572 = vld [vmem:[#allocation10 + $0x8] sm:$0xff]
    %v573 = vld [vmem:[#allocation10 + $0x10] sm:$0xff]
    %v574 = vld [vmem:[#allocation10 + $0x18] sm:$0xff]
    %v575 = vld [vmem:[#allocation10 + $0x20] sm:$0xff]
    %v576 = vld [vmem:[#allocation10 + $0x28] sm:$0xff]
    %v577 = vld [vmem:[#allocation10 + $0x30] sm:$0xff]
    %v578 = vld [vmem:[#allocation10 + $0x38] sm:$0xff]
    %v579 = vld [vmem:[#allocation10 + $0x40] sm:$0xff]
    %v580 = vld [vmem:[#allocation10 + $0x48] sm:$0xff]
    %v581 = vld [vmem:[#allocation10 + $0x50] sm:$0xff]
    %v582 = vld [vmem:[#allocation10 + $0x58] sm:$0xff]
    %v583 = vld [vmem:[#allocation10 + $0x60] sm:$0xff]
    %v584 = vld [vmem:[#allocation10 + $0x68] sm:$0xff]
    %v585 = vld [vmem:[#allocation10 + $0x70] sm:$0xff]
    %v586 = vld [vmem:[#allocation10 + $0x78] sm:$0xff]
    %v587 = vld [vmem:[%s6] sm:$0x1]
    %v589 = vlaneseq
    %v590 = vshrl.u32 %v589, 7
    %v591 = vsub.s32 0, %v590
    %v592 = vrot.slane %v587, %v591
    %594 = vmatprep.subr.mxu0 0.0
    %595 = vmatpush1.msra.mxu0 %v571
    %596 = vmatprep.subr.mxu0 0.0
    %597 = vmatpush1.msra.mxu0 %v572
    %598 = vmatprep.subr.mxu0 0.0
    %599 = vmatpush1.msra.mxu0 %v573
    %600 = vmatprep.subr.mxu0 0.0
    %601 = vmatpush1.msra.mxu0 %v574
    %602 = vmatprep.subr.mxu0 0.0
    %603 = vmatpush1.msra.mxu0 %v575
    %604 = vmatprep.subr.mxu0 0.0
    %605 = vmatpush1.msra.mxu0 %v576
    %606 = vmatprep.subr.mxu0 0.0
    %607 = vmatpush1.msra.mxu0 %v577
    %608 = vmatprep.subr.mxu0 0.0
    %609 = vmatpush1.msra.mxu0 %v578
    %610 = vmatprep.subr.mxu0 0.0
    %611 = vmatpush1.msra.mxu0 %v579
    %612 = vmatprep.subr.mxu0 0.0
    %613 = vmatpush1.msra.mxu0 %v580
    %614 = vmatprep.subr.mxu0 0.0
    %615 = vmatpush1.msra.mxu0 %v581
    %616 = vmatprep.subr.mxu0 0.0
    %617 = vmatpush1.msra.mxu0 %v582
    %618 = vmatprep.subr.mxu0 0.0
    %619 = vmatpush1.msra.mxu0 %v583
    %620 = vmatprep.subr.mxu0 0.0
    %621 = vmatpush1.msra.mxu0 %v584
    %622 = vmatprep.subr.mxu0 0.0
    %623 = vmatpush1.msra.mxu0 %v585
    %624 = vmatprep.subr.mxu0 0.0
    %625 = vmatpush1.msra.mxu0 %v586
    %626 = vmatprep.subr.mxu0 0.0
    %627 = vmatpush1.msra.mxu0 0.0
    %628 = vmatprep.subr.mxu0 0.0
    %629 = vmatpush1.msra.mxu0 0.0
    %630 = vmatprep.subr.mxu0 0.0
    %631 = vmatpush1.msra.mxu0 0.0
    %632 = vmatprep.subr.mxu0 0.0
    %633 = vmatpush1.msra.mxu0 0.0
    %634 = vmatprep.subr.mxu0 0.0
    %635 = vmatpush1.msra.mxu0 0.0
    %636 = vmatprep.subr.mxu0 0.0
    %637 = vmatpush1.msra.mxu0 0.0
    %638 = vmatprep.subr.mxu0 0.0
    %639 = vmatpush1.msra.mxu0 0.0
    %640 = vmatprep.subr.mxu0 0.0
    %641 = vmatpush1.msra.mxu0 0.0
    %642 = vmatprep.subr.mxu0 0.0
    %643 = vmatpush1.msra.mxu0 0.0
    %644 = vmatprep.subr.mxu0 0.0
    %645 = vmatpush1.msra.mxu0 0.0
    %646 = vmatprep.subr.mxu0 0.0
    %647 = vmatpush1.msra.mxu0 0.0
    %648 = vmatprep.subr.mxu0 0.0
    %649 = vmatpush1.msra.mxu0 0.0
    %650 = vmatprep.subr.mxu0 0.0
    %651 = vmatpush1.msra.mxu0 0.0
    %652 = vmatprep.subr.mxu0 0.0
    %653 = vmatpush1.msra.mxu0 0.0
    %654 = vmatprep.subr.mxu0 0.0
    %655 = vmatpush1.msra.mxu0 0.0
    %656 = vmatprep.subr.mxu0 0.0
    %657 = vmatpush1.msra.mxu0 0.0
    %658 = vmatprep.mubr.f32.mxu0 0.0
    %659 = vmatmul.mubr.f32.gmra.mrb[0].mxu0 %v568
    %v660 = vpop.f32.mrb[0].mxu0
    %v661 = vadd.f32 %v592, %v660
    %v662 = vpop.f32.mrb[0].mxu0
    %663 = vmatprep.mubr.f32.mxu0 0.0
    %664 = vmatmul.mubr.f32.gmra.mrb[0].mxu0 %v569
    %v665 = vpop.f32.mrb[0].mxu0
    %v666 = vadd.f32 %v592, %v665
    %v667 = vpop.f32.mrb[0].mxu0
    %668 = vmatprep.mubr.f32.mxu0 0.0
    %669 = vmatmul.mubr.f32.gmra.mrb[0].mxu0 %v570
    %v670 = vpop.f32.mrb[0].mxu0
    %v671 = vadd.f32 %v592, %v670
    %v672 = vpop.f32.mrb[0].mxu0
    %673 = vdwg.mxu0
    %674 = vst [vmem:[#allocation11] sm:$0xff] %v661
    %675 = vst [vmem:[#allocation11 + $0x8] sm:$0xff] %v666
    %676 = vst [vmem:[#allocation11 + $0x10] sm:$0xff] %v671
    // Predicated region
    $region50: #{tpu_custom_call.1} parent=1 // pred_check
      _
    $region51: #{tpu_custom_call.1} parent=1 // pred_check_branch
      %678 = sbr.rel (0) target = $region53
    $region52: #{tpu_custom_call.1} parent=1 // pred_region
      %s680 = ssub.s32 384, 384
      %681 = vsyncadd [#allocation4], %s680
      %s682 = sshll.u32 [#allocation11], 4
      %s683 = int_to_ptr.vmem [resolvable:$true] %s682
      %688 = dma.vmem_to_hbm [thread:$0]  %s683, 384, %s7, [#allocation4], 128, 128, 8
    $region53: #{tpu_custom_call.1} parent=1 // pred_fallthru
      _
    // Predicated region
    $region54: #{tpu_custom_call.1} parent=1 // pred_check
      _
    $region55: #{tpu_custom_call.1} parent=1 // pred_check_branch
      %690 = sbr.rel (0) target = $region57
    $region56: #{tpu_custom_call.1} parent=1 // pred_region
      %691 = dma.done [#allocation4], 384
    $region57: #{tpu_custom_call.1} parent=1 // pred_fallthru
      _
    %692 = vsyncpa [#allocation3], 1
    %693 = vsyncpa [#allocation6], 1
    %694 = vsyncpa [#allocation9], 1
    %695 = vsyncpa [#allocation4], 1

</llo_original>
